<compile_context>
chip_gen: v5e
topology: v5e:2x2
jax: 0.10.0
libtpu: 0.0.40
codegen_flags: <defaults>
</compile_context>

<pallas_src>
from functools import partial

import jax
import jax.numpy as jnp
from jax.experimental import pallas as pl
from jax.experimental.pallas import tpu as pltpu


def _round_up(x, m):
    return (x + m - 1) // m * m


# --------------------------------------------------------------------------
# Kernel: single fused matmul  out = codes @ packed_basis
#   codes_ref : (Mp, 2K)  f32   (rows >= vn are zero padding)
#   basis_ref : (2K, N)   f32
#   o_ref     : (vn, N)   f32   (only the real rows are written)
# --------------------------------------------------------------------------
def _geometry_kernel(codes_ref, basis_ref, o_ref):
    acc = jnp.dot(codes_ref[...], basis_ref[...],
                  preferred_element_type=jnp.float32)
    o_ref[...] = acc[:o_ref.shape[0], :].astype(o_ref.dtype)


# --------------------------------------------------------------------------
# One-time parameter packing (analogue of loading the nn.Parameters):
# flatten both (K, 64, 64) bases and stack them along K -> (2K, 4096) f32.
# --------------------------------------------------------------------------
def pack_face_model_basis(sub_geometry, sub_expression):
    K, H, W = sub_geometry.shape
    assert sub_expression.shape == (K, H, W)
    N = H * W
    return jnp.concatenate(
        [sub_geometry.reshape(K, N), sub_expression.reshape(K, N)],
        axis=0).astype(jnp.float32)


# --------------------------------------------------------------------------
# Forward: FaceModelGeometry.forward(id_code, ex_code, vn)
# --------------------------------------------------------------------------
@partial(jax.jit, static_argnames=("height", "width"))
def face_model_geometry(id_code, ex_code, packed_basis, height=64, width=64):
    """id_code, ex_code: (vn, K) f32; packed_basis: (2K, H*W) f32 -> (vn, H, W) f32."""
    vn, K = id_code.shape
    K2, N = packed_basis.shape
    assert K2 == 2 * K
    assert N == height * width
    assert N % 128 == 0, "spatial size must be lane-aligned"

    # Pad the tiny concatenated code matrix to a sublane multiple (>= 8 rows).
    # Padded rows are zero, so they contribute nothing; they are never stored.
    Mp = max(_round_up(vn, 8), 8)
    codes = jnp.zeros((Mp, K2), jnp.float32)
    codes = codes.at[:vn, :K].set(id_code.astype(jnp.float32))
    codes = codes.at[:vn, K:].set(ex_code.astype(jnp.float32))

    cost = pl.CostEstimate(
        flops=2 * Mp * K2 * N,
        transcendentals=0,
        bytes_accessed=4 * (Mp * K2 + K2 * N + vn * N),
    )

    out = pl.pallas_call(
        _geometry_kernel,
        out_shape=jax.ShapeDtypeStruct((vn, N), jnp.float32),
        grid_spec=pltpu.PrefetchScalarGridSpec(
            num_scalar_prefetch=0,
            grid=(1,),  # single step: the whole problem fits trivially in VMEM
            in_specs=[
                pl.BlockSpec((Mp, K2), lambda i: (0, 0)),   # packed codes
                pl.BlockSpec((K2, N), lambda i: (0, 0)),    # packed bases
            ],
            out_specs=pl.BlockSpec((vn, N), lambda i: (0, 0)),
        ),
        compiler_params=pltpu.CompilerParams(
            dimension_semantics=("arbitrary",)),
        cost_estimate=cost,
    )(codes, packed_basis)

    return out.reshape(vn, height, width)


# --------------------------------------------------------------------------
# Pure-JAX reference (mirrors the PyTorch forward exactly, in f32)
# --------------------------------------------------------------------------
def reference(id_code, ex_code, sub_geometry, sub_expression):
    return (jnp.einsum("vk,khw->vhw", id_code, sub_geometry)
            + jnp.einsum("vk,khw->vhw", ex_code, sub_expression))


if __name__ == "__main__":
    LoR_K, vn, H, W = 8, 2, 64, 64

    key = jax.random.PRNGKey(0)
    k_geo, k_exp, k_id, k_ex = jax.random.split(key, 4)

    # nn.Parameter init is zeros in the module; use random values here so the
    # numerical check is meaningful.  Forward semantics are unchanged.
    sub_geometry = jax.random.normal(k_geo, (LoR_K, H, W), jnp.float32)
    sub_expression = jax.random.normal(k_exp, (LoR_K, H, W), jnp.float32)
    id_code = jax.random.normal(k_id, (vn, LoR_K), jnp.float32)
    ex_code = jax.random.normal(k_ex, (vn, LoR_K), jnp.float32)

    # Pack the bases once ("parameter load"), then run the fused forward.
    packed_basis = jax.block_until_ready(
        pack_face_model_basis(sub_geometry, sub_expression))

    out = face_model_geometry(id_code, ex_code, packed_basis,
                              height=H, width=W)
    out = jax.block_until_ready(out)

    ref = reference(id_code, ex_code, sub_geometry, sub_expression)

    assert out.shape == (vn, H, W), out.shape
    assert bool(jnp.all(jnp.isfinite(out)))
    # f32 operands with f32 accumulation -> tight tolerance vs. the reference.
    err = jnp.max(jnp.abs(out - ref)) / (jnp.max(jnp.abs(ref)) + 1e-6)
    assert float(err) < 1e-5, float(err)

    print("KERNEL_OK")
</pallas_src>

<mosaic_0001>
module attributes {stable_mosaic.version = 11 : i64} {
  func.func @_geometry_kernel(%arg0: i32, %arg1: memref<8x16xf32, #tpu.memory_space<vmem>>, %arg2: memref<16x4096xf32, #tpu.memory_space<vmem>>, %arg3: memref<2x4096xf32, #tpu.memory_space<vmem>>) attributes {dimension_semantics = [#tpu.dimension_semantics<arbitrary>], iteration_bounds = array<i64: 1>, scalar_prefetch = 0 : i64, scratch_operands = 0 : i64, tpu.core_type = #tpu.core_type<tc>, window_params = [{pipeline_mode = #tpu.pipeline_mode<synchronous>, transform_indices = @transform_0, window_bounds = array<i64: 8, 16>}, {pipeline_mode = #tpu.pipeline_mode<synchronous>, transform_indices = @transform_1, window_bounds = array<i64: 16, 4096>}, {pipeline_mode = #tpu.pipeline_mode<synchronous>, transform_indices = @transform_2, window_bounds = array<i64: 2, 4096>}]} {
    %c0 = arith.constant 0 : index
    %c0_0 = arith.constant 0 : index
    %0 = vector.load %arg1[%c0, %c0_0] : memref<8x16xf32, #tpu.memory_space<vmem>>, vector<8x16xf32>
    %c0_1 = arith.constant 0 : index
    %c0_2 = arith.constant 0 : index
    %1 = vector.load %arg2[%c0_1, %c0_2] : memref<16x4096xf32, #tpu.memory_space<vmem>>, vector<16x4096xf32>
    %cst = arith.constant dense<0.000000e+00> : vector<8x4096xf32>
    %2 = tpu.matmul %0, %1, %cst {dimension_numbers = #tpu.dot_dimension_numbers<[1], [0], [0], [1], [0, 0, 1, 1], [], []>} : vector<8x16xf32>, vector<16x4096xf32>, vector<8x4096xf32> -> vector<8x4096xf32>
    %3 = vector.extract_strided_slice %2 {offsets = [0, 0], sizes = [2, 4096], strides = [1, 1]} : vector<8x4096xf32> to vector<2x4096xf32>
    %c0_3 = arith.constant 0 : index
    %c0_4 = arith.constant 0 : index
    %4 = vector.load %arg3[%c0_3, %c0_4] : memref<2x4096xf32, #tpu.memory_space<vmem>>, vector<2x4096xf32>
    tpu.vector_store %arg3[%c0_3, %c0_4], %3 {strides = array<i32>} : memref<2x4096xf32, #tpu.memory_space<vmem>>, vector<2x4096xf32>,
    return
  }
  func.func @transform_0(%arg0: i32) -> (i32, i32) {
    %c0_i32 = arith.constant 0 : i32
    %c0_i32_0 = arith.constant 0 : i32
    %c0_i32_1 = arith.constant 0 : i32
    return %c0_i32, %c0_i32_0 : i32, i32
  }
  func.func @transform_1(%arg0: i32) -> (i32, i32) {
    %c0_i32 = arith.constant 0 : i32
    %c0_i32_0 = arith.constant 0 : i32
    %c0_i32_1 = arith.constant 0 : i32
    return %c0_i32, %c0_i32_0 : i32, i32
  }
  func.func @transform_2(%arg0: i32) -> (i32, i32) {
    %c0_i32 = arith.constant 0 : i32
    %c0_i32_0 = arith.constant 0 : i32
    %c0_i32_1 = arith.constant 0 : i32
    return %c0_i32, %c0_i32_0 : i32, i32
  }
}

</mosaic_0001>

<llo_original>
// kernel: face_model_geometry.1
$region0: #{face_model_geometry.1}
  #allocation0 [shape = 'u32[]', space=smem, size = 0x4, offset = 0x4, fixed_abs, tag = 'smem constant byte address 0x4 - core index']
  #allocation1 [shape = 'u32[72,128]{1,0:T(1,128)}', space=vmem, size = 0x9000, scoped, tag = 'internal scratch']
  %s0 = inlined_call_operand.vmem [shape: f32[8,16], index: 0, kind: input, shape index: {}]
  %s1 = inlined_call_operand.hbm [shape: f32[16,4096], index: 1, kind: input, shape index: {}]
  %s2 = inlined_call_operand.vmem [shape: f32[2,4096], index: 2, kind: output, shape index: {}]
  %s3 = sld [smem:[#allocation0]]
  $region22: #{face_model_geometry.1} parent=0
    _
  %s5 = ssub.s32 1, %s3
  %s6 = scalar_select 0, %s5, %s3
  $region1: #{face_model_geometry.1} parent=0
    #allocation2 [shape = 'u8[262144]{0}', space=vmem, size = 0x40000, scoped, tag = 'input window, operand 1, single buffered']
    #allocation3 [shape = 's32[1]{0}', space=sflag, size = 0x4, scoped, tag = 'scoped memory for face_model_geometry.1']
    %7 = vsyncpa [#allocation3], 0
    // Predicated region
    $region2: #{face_model_geometry.1} parent=1 // pred_check
      _
    $region3: #{face_model_geometry.1} parent=1 // pred_check_branch
      %9 = sbr.rel (0) target = $region5
    $region4: #{face_model_geometry.1} parent=1 // pred_region
      _
    $region5: #{face_model_geometry.1} parent=1 // pred_fallthru
      _
    // Predicated region
    $region6: #{face_model_geometry.1} parent=1 // pred_check
      _
    $region7: #{face_model_geometry.1} parent=1 // pred_check_branch
      %11 = sbr.rel (0) target = $region9
    $region8: #{face_model_geometry.1} parent=1 // pred_region
      %13 = vsyncadd [#allocation3], 0
      %s14 = sshll.u32 %s1, 4
      %s15 = int_to_ptr.hbm [resolvable:$true] %s14
      %s16 = sshll.u32 [#allocation2], 4
      %s17 = int_to_ptr.vmem [resolvable:$true] %s16
      %22 = dma.hbm_to_vmem [thread:$0]  %s15, 8192, %s17, [#allocation3], 4096, 4096, 256
    $region9: #{face_model_geometry.1} parent=1 // pred_fallthru
      _
    // Predicated region
    $region10: #{face_model_geometry.1} parent=1 // pred_check
      _
    $region11: #{face_model_geometry.1} parent=1 // pred_check_branch
      %24 = sbr.rel (0) target = $region13
    $region12: #{face_model_geometry.1} parent=1 // pred_region
      %26 = dma.done [#allocation3], 8192
    $region13: #{face_model_geometry.1} parent=1 // pred_fallthru
      _
    %v27 = vld [vmem:[%s0] sm:$0xff]
    %v28 = vld [vmem:[#allocation2] sm:$0xff]
    %v29 = vld [vmem:[#allocation2 + $0x8] sm:$0xff]
    %v30 = vld [vmem:[#allocation2 + $0x10] sm:$0xff]
    %v31 = vld [vmem:[#allocation2 + $0x18] sm:$0xff]
    %v32 = vld [vmem:[#allocation2 + $0x20] sm:$0xff]
    %v33 = vld [vmem:[#allocation2 + $0x28] sm:$0xff]
    %v34 = vld [vmem:[#allocation2 + $0x30] sm:$0xff]
    %v35 = vld [vmem:[#allocation2 + $0x38] sm:$0xff]
    %v36 = vld [vmem:[#allocation2 + $0x40] sm:$0xff]
    %v37 = vld [vmem:[#allocation2 + $0x48] sm:$0xff]
    %v38 = vld [vmem:[#allocation2 + $0x50] sm:$0xff]
    %v39 = vld [vmem:[#allocation2 + $0x58] sm:$0xff]
    %v40 = vld [vmem:[#allocation2 + $0x60] sm:$0xff]
    %v41 = vld [vmem:[#allocation2 + $0x68] sm:$0xff]
    %v42 = vld [vmem:[#allocation2 + $0x70] sm:$0xff]
    %v43 = vld [vmem:[#allocation2 + $0x78] sm:$0xff]
    %v44 = vld [vmem:[#allocation2 + $0x80] sm:$0xff]
    %v45 = vld [vmem:[#allocation2 + $0x88] sm:$0xff]
    %v46 = vld [vmem:[#allocation2 + $0x90] sm:$0xff]
    %v47 = vld [vmem:[#allocation2 + $0x98] sm:$0xff]
    %v48 = vld [vmem:[#allocation2 + $0xa0] sm:$0xff]
    %v49 = vld [vmem:[#allocation2 + $0xa8] sm:$0xff]
    %v50 = vld [vmem:[#allocation2 + $0xb0] sm:$0xff]
    %v51 = vld [vmem:[#allocation2 + $0xb8] sm:$0xff]
    %v52 = vld [vmem:[#allocation2 + $0xc0] sm:$0xff]
    %v53 = vld [vmem:[#allocation2 + $0xc8] sm:$0xff]
    %v54 = vld [vmem:[#allocation2 + $0xd0] sm:$0xff]
    %v55 = vld [vmem:[#allocation2 + $0xd8] sm:$0xff]
    %v56 = vld [vmem:[#allocation2 + $0xe0] sm:$0xff]
    %v57 = vld [vmem:[#allocation2 + $0xe8] sm:$0xff]
    %v58 = vld [vmem:[#allocation2 + $0xf0] sm:$0xff]
    %v59 = vld [vmem:[#allocation2 + $0xf8] sm:$0xff]
    %v60 = vld [vmem:[#allocation2 + $0x100] sm:$0xff]
    %v61 = vld [vmem:[#allocation2 + $0x108] sm:$0xff]
    %v62 = vld [vmem:[#allocation2 + $0x110] sm:$0xff]
    %v63 = vld [vmem:[#allocation2 + $0x118] sm:$0xff]
    %v64 = vld [vmem:[#allocation2 + $0x120] sm:$0xff]
    %v65 = vld [vmem:[#allocation2 + $0x128] sm:$0xff]
    %v66 = vld [vmem:[#allocation2 + $0x130] sm:$0xff]
    %v67 = vld [vmem:[#allocation2 + $0x138] sm:$0xff]
    %v68 = vld [vmem:[#allocation2 + $0x140] sm:$0xff]
    %v69 = vld [vmem:[#allocation2 + $0x148] sm:$0xff]
    %v70 = vld [vmem:[#allocation2 + $0x150] sm:$0xff]
    %v71 = vld [vmem:[#allocation2 + $0x158] sm:$0xff]
    %v72 = vld [vmem:[#allocation2 + $0x160] sm:$0xff]
    %v73 = vld [vmem:[#allocation2 + $0x168] sm:$0xff]
    %v74 = vld [vmem:[#allocation2 + $0x170] sm:$0xff]
    %v75 = vld [vmem:[#allocation2 + $0x178] sm:$0xff]
    %v76 = vld [vmem:[#allocation2 + $0x180] sm:$0xff]
    %v77 = vld [vmem:[#allocation2 + $0x188] sm:$0xff]
    %v78 = vld [vmem:[#allocation2 + $0x190] sm:$0xff]
    %v79 = vld [vmem:[#allocation2 + $0x198] sm:$0xff]
    %v80 = vld [vmem:[#allocation2 + $0x1a0] sm:$0xff]
    %v81 = vld [vmem:[#allocation2 + $0x1a8] sm:$0xff]
    %v82 = vld [vmem:[#allocation2 + $0x1b0] sm:$0xff]
    %v83 = vld [vmem:[#allocation2 + $0x1b8] sm:$0xff]
    %v84 = vld [vmem:[#allocation2 + $0x1c0] sm:$0xff]
    %v85 = vld [vmem:[#allocation2 + $0x1c8] sm:$0xff]
    %v86 = vld [vmem:[#allocation2 + $0x1d0] sm:$0xff]
    %v87 = vld [vmem:[#allocation2 + $0x1d8] sm:$0xff]
    %v88 = vld [vmem:[#allocation2 + $0x1e0] sm:$0xff]
    %v89 = vld [vmem:[#allocation2 + $0x1e8] sm:$0xff]
    %v90 = vld [vmem:[#allocation2 + $0x1f0] sm:$0xff]
    %v91 = vld [vmem:[#allocation2 + $0x1f8] sm:$0xff]
    %vm92 = vcmask 130048
    %v94 = vsel %vm92, %v27, 0
    %96 = vmatpush.msra.mxu0 0.0
    %97 = vmatpush.msra.mxu0 0.0
    %98 = vmatpush.msra.mxu0 0.0
    %99 = vmatpush.msra.mxu0 0.0
    %100 = vmatpush.msra.mxu0 0.0
    %101 = vmatpush.msra.mxu0 0.0
    %102 = vmatpush.msra.mxu0 0.0
    %103 = vmatpush.msra.mxu0 0.0
    %104 = vmatpush.msra.mxu0 0.0
    %105 = vmatpush.msra.mxu0 0.0
    %106 = vmatpush.msra.mxu0 0.0
    %107 = vmatpush.msra.mxu0 0.0
    %108 = vmatpush.msra.mxu0 0.0
    %109 = vmatpush.msra.mxu0 0.0
    %110 = vmatpush.msra.mxu0 %v60
    %111 = vmatpush.msra.mxu0 %v28
    %112 = vmatmul.f32.gmra.mxu0 %v94
    %v113 = vpop.f32.mrf.mxu0
    %v114 = vadd.f32 0.0, %v113
    %115 = vdwg.mxu0
    %116 = vmatpush.msra.mxu0 0.0
    %117 = vmatpush.msra.mxu0 0.0
    %118 = vmatpush.msra.mxu0 0.0
    %119 = vmatpush.msra.mxu0 0.0
    %120 = vmatpush.msra.mxu0 0.0
    %121 = vmatpush.msra.mxu0 0.0
    %122 = vmatpush.msra.mxu0 0.0
    %123 = vmatpush.msra.mxu0 0.0
    %124 = vmatpush.msra.mxu0 0.0
    %125 = vmatpush.msra.mxu0 0.0
    %126 = vmatpush.msra.mxu0 0.0
    %127 = vmatpush.msra.mxu0 0.0
    %128 = vmatpush.msra.mxu0 0.0
    %129 = vmatpush.msra.mxu0 0.0
    %130 = vmatpush.msra.mxu0 %v61
    %131 = vmatpush.msra.mxu0 %v29
    %132 = vmatmul.f32.gmra.mxu0 %v94
    %v133 = vpop.f32.mrf.mxu0
    %v134 = vadd.f32 0.0, %v133
    %135 = vdwg.mxu0
    %136 = vmatpush.msra.mxu0 0.0
    %137 = vmatpush.msra.mxu0 0.0
    %138 = vmatpush.msra.mxu0 0.0
    %139 = vmatpush.msra.mxu0 0.0
    %140 = vmatpush.msra.mxu0 0.0
    %141 = vmatpush.msra.mxu0 0.0
    %142 = vmatpush.msra.mxu0 0.0
    %143 = vmatpush.msra.mxu0 0.0
    %144 = vmatpush.msra.mxu0 0.0
    %145 = vmatpush.msra.mxu0 0.0
    %146 = vmatpush.msra.mxu0 0.0
    %147 = vmatpush.msra.mxu0 0.0
    %148 = vmatpush.msra.mxu0 0.0
    %149 = vmatpush.msra.mxu0 0.0
    %150 = vmatpush.msra.mxu0 %v62
    %151 = vmatpush.msra.mxu0 %v30
    %152 = vmatmul.f32.gmra.mxu0 %v94
    %v153 = vpop.f32.mrf.mxu0
    %v154 = vadd.f32 0.0, %v153
    %155 = vdwg.mxu0
    %156 = vmatpush.msra.mxu0 0.0
    %157 = vmatpush.msra.mxu0 0.0
    %158 = vmatpush.msra.mxu0 0.0
    %159 = vmatpush.msra.mxu0 0.0
    %160 = vmatpush.msra.mxu0 0.0
    %161 = vmatpush.msra.mxu0 0.0
    %162 = vmatpush.msra.mxu0 0.0
    %163 = vmatpush.msra.mxu0 0.0
    %164 = vmatpush.msra.mxu0 0.0
    %165 = vmatpush.msra.mxu0 0.0
    %166 = vmatpush.msra.mxu0 0.0
    %167 = vmatpush.msra.mxu0 0.0
    %168 = vmatpush.msra.mxu0 0.0
    %169 = vmatpush.msra.mxu0 0.0
    %170 = vmatpush.msra.mxu0 %v63
    %171 = vmatpush.msra.mxu0 %v31
    %172 = vmatmul.f32.gmra.mxu0 %v94
    %v173 = vpop.f32.mrf.mxu0
    %v174 = vadd.f32 0.0, %v173
    %175 = vdwg.mxu0
    %176 = vmatpush.msra.mxu0 0.0
    %177 = vmatpush.msra.mxu0 0.0
    %178 = vmatpush.msra.mxu0 0.0
    %179 = vmatpush.msra.mxu0 0.0
    %180 = vmatpush.msra.mxu0 0.0
    %181 = vmatpush.msra.mxu0 0.0
    %182 = vmatpush.msra.mxu0 0.0
    %183 = vmatpush.msra.mxu0 0.0
    %184 = vmatpush.msra.mxu0 0.0
    %185 = vmatpush.msra.mxu0 0.0
    %186 = vmatpush.msra.mxu0 0.0
    %187 = vmatpush.msra.mxu0 0.0
    %188 = vmatpush.msra.mxu0 0.0
    %189 = vmatpush.msra.mxu0 0.0
    %190 = vmatpush.msra.mxu0 %v64
    %191 = vmatpush.msra.mxu0 %v32
    %192 = vmatmul.f32.gmra.mxu0 %v94
    %v193 = vpop.f32.mrf.mxu0
    %v194 = vadd.f32 0.0, %v193
    %195 = vdwg.mxu0
    %196 = vmatpush.msra.mxu0 0.0
    %197 = vmatpush.msra.mxu0 0.0
    %198 = vmatpush.msra.mxu0 0.0
    %199 = vmatpush.msra.mxu0 0.0
    %200 = vmatpush.msra.mxu0 0.0
    %201 = vmatpush.msra.mxu0 0.0
    %202 = vmatpush.msra.mxu0 0.0
    %203 = vmatpush.msra.mxu0 0.0
    %204 = vmatpush.msra.mxu0 0.0
    %205 = vmatpush.msra.mxu0 0.0
    %206 = vmatpush.msra.mxu0 0.0
    %207 = vmatpush.msra.mxu0 0.0
    %208 = vmatpush.msra.mxu0 0.0
    %209 = vmatpush.msra.mxu0 0.0
    %210 = vmatpush.msra.mxu0 %v65
    %211 = vmatpush.msra.mxu0 %v33
    %212 = vmatmul.f32.gmra.mxu0 %v94
    %v213 = vpop.f32.mrf.mxu0
    %v214 = vadd.f32 0.0, %v213
    %215 = vdwg.mxu0
    %216 = vmatpush.msra.mxu0 0.0
    %217 = vmatpush.msra.mxu0 0.0
    %218 = vmatpush.msra.mxu0 0.0
    %219 = vmatpush.msra.mxu0 0.0
    %220 = vmatpush.msra.mxu0 0.0
    %221 = vmatpush.msra.mxu0 0.0
    %222 = vmatpush.msra.mxu0 0.0
    %223 = vmatpush.msra.mxu0 0.0
    %224 = vmatpush.msra.mxu0 0.0
    %225 = vmatpush.msra.mxu0 0.0
    %226 = vmatpush.msra.mxu0 0.0
    %227 = vmatpush.msra.mxu0 0.0
    %228 = vmatpush.msra.mxu0 0.0
    %229 = vmatpush.msra.mxu0 0.0
    %230 = vmatpush.msra.mxu0 %v66
    %231 = vmatpush.msra.mxu0 %v34
    %232 = vmatmul.f32.gmra.mxu0 %v94
    %v233 = vpop.f32.mrf.mxu0
    %v234 = vadd.f32 0.0, %v233
    %235 = vdwg.mxu0
    %236 = vmatpush.msra.mxu0 0.0
    %237 = vmatpush.msra.mxu0 0.0
    %238 = vmatpush.msra.mxu0 0.0
    %239 = vmatpush.msra.mxu0 0.0
    %240 = vmatpush.msra.mxu0 0.0
    %241 = vmatpush.msra.mxu0 0.0
    %242 = vmatpush.msra.mxu0 0.0
    %243 = vmatpush.msra.mxu0 0.0
    %244 = vmatpush.msra.mxu0 0.0
    %245 = vmatpush.msra.mxu0 0.0
    %246 = vmatpush.msra.mxu0 0.0
    %247 = vmatpush.msra.mxu0 0.0
    %248 = vmatpush.msra.mxu0 0.0
    %249 = vmatpush.msra.mxu0 0.0
    %250 = vmatpush.msra.mxu0 %v67
    %251 = vmatpush.msra.mxu0 %v35
    %252 = vmatmul.f32.gmra.mxu0 %v94
    %v253 = vpop.f32.mrf.mxu0
    %v254 = vadd.f32 0.0, %v253
    %255 = vdwg.mxu0
    %256 = vmatpush.msra.mxu0 0.0
    %257 = vmatpush.msra.mxu0 0.0
    %258 = vmatpush.msra.mxu0 0.0
    %259 = vmatpush.msra.mxu0 0.0
    %260 = vmatpush.msra.mxu0 0.0
    %261 = vmatpush.msra.mxu0 0.0
    %262 = vmatpush.msra.mxu0 0.0
    %263 = vmatpush.msra.mxu0 0.0
    %264 = vmatpush.msra.mxu0 0.0
    %265 = vmatpush.msra.mxu0 0.0
    %266 = vmatpush.msra.mxu0 0.0
    %267 = vmatpush.msra.mxu0 0.0
    %268 = vmatpush.msra.mxu0 0.0
    %269 = vmatpush.msra.mxu0 0.0
    %270 = vmatpush.msra.mxu0 %v68
    %271 = vmatpush.msra.mxu0 %v36
    %272 = vmatmul.f32.gmra.mxu0 %v94
    %v273 = vpop.f32.mrf.mxu0
    %v274 = vadd.f32 0.0, %v273
    %275 = vdwg.mxu0
    %276 = vmatpush.msra.mxu0 0.0
    %277 = vmatpush.msra.mxu0 0.0
    %278 = vmatpush.msra.mxu0 0.0
    %279 = vmatpush.msra.mxu0 0.0
    %280 = vmatpush.msra.mxu0 0.0
    %281 = vmatpush.msra.mxu0 0.0
    %282 = vmatpush.msra.mxu0 0.0
    %283 = vmatpush.msra.mxu0 0.0
    %284 = vmatpush.msra.mxu0 0.0
    %285 = vmatpush.msra.mxu0 0.0
    %286 = vmatpush.msra.mxu0 0.0
    %287 = vmatpush.msra.mxu0 0.0
    %288 = vmatpush.msra.mxu0 0.0
    %289 = vmatpush.msra.mxu0 0.0
    %290 = vmatpush.msra.mxu0 %v69
    %291 = vmatpush.msra.mxu0 %v37
    %292 = vmatmul.f32.gmra.mxu0 %v94
    %v293 = vpop.f32.mrf.mxu0
    %v294 = vadd.f32 0.0, %v293
    %295 = vdwg.mxu0
    %296 = vmatpush.msra.mxu0 0.0
    %297 = vmatpush.msra.mxu0 0.0
    %298 = vmatpush.msra.mxu0 0.0
    %299 = vmatpush.msra.mxu0 0.0
    %300 = vmatpush.msra.mxu0 0.0
    %301 = vmatpush.msra.mxu0 0.0
    %302 = vmatpush.msra.mxu0 0.0
    %303 = vmatpush.msra.mxu0 0.0
    %304 = vmatpush.msra.mxu0 0.0
    %305 = vmatpush.msra.mxu0 0.0
    %306 = vmatpush.msra.mxu0 0.0
    %307 = vmatpush.msra.mxu0 0.0
    %308 = vmatpush.msra.mxu0 0.0
    %309 = vmatpush.msra.mxu0 0.0
    %310 = vmatpush.msra.mxu0 %v70
    %311 = vmatpush.msra.mxu0 %v38
    %312 = vmatmul.f32.gmra.mxu0 %v94
    %v313 = vpop.f32.mrf.mxu0
    %v314 = vadd.f32 0.0, %v313
    %315 = vdwg.mxu0
    %316 = vmatpush.msra.mxu0 0.0
    %317 = vmatpush.msra.mxu0 0.0
    %318 = vmatpush.msra.mxu0 0.0
    %319 = vmatpush.msra.mxu0 0.0
    %320 = vmatpush.msra.mxu0 0.0
    %321 = vmatpush.msra.mxu0 0.0
    %322 = vmatpush.msra.mxu0 0.0
    %323 = vmatpush.msra.mxu0 0.0
    %324 = vmatpush.msra.mxu0 0.0
    %325 = vmatpush.msra.mxu0 0.0
    %326 = vmatpush.msra.mxu0 0.0
    %327 = vmatpush.msra.mxu0 0.0
    %328 = vmatpush.msra.mxu0 0.0
    %329 = vmatpush.msra.mxu0 0.0
    %330 = vmatpush.msra.mxu0 %v71
    %331 = vmatpush.msra.mxu0 %v39
    %332 = vmatmul.f32.gmra.mxu0 %v94
    %v333 = vpop.f32.mrf.mxu0
    %v334 = vadd.f32 0.0, %v333
    %335 = vdwg.mxu0
    %336 = vmatpush.msra.mxu0 0.0
    %337 = vmatpush.msra.mxu0 0.0
    %338 = vmatpush.msra.mxu0 0.0
    %339 = vmatpush.msra.mxu0 0.0
    %340 = vmatpush.msra.mxu0 0.0
    %341 = vmatpush.msra.mxu0 0.0
    %342 = vmatpush.msra.mxu0 0.0
    %343 = vmatpush.msra.mxu0 0.0
    %344 = vmatpush.msra.mxu0 0.0
    %345 = vmatpush.msra.mxu0 0.0
    %346 = vmatpush.msra.mxu0 0.0
    %347 = vmatpush.msra.mxu0 0.0
    %348 = vmatpush.msra.mxu0 0.0
    %349 = vmatpush.msra.mxu0 0.0
    %350 = vmatpush.msra.mxu0 %v72
    %351 = vmatpush.msra.mxu0 %v40
    %352 = vmatmul.f32.gmra.mxu0 %v94
    %v353 = vpop.f32.mrf.mxu0
    %v354 = vadd.f32 0.0, %v353
    %355 = vdwg.mxu0
    %356 = vmatpush.msra.mxu0 0.0
    %357 = vmatpush.msra.mxu0 0.0
    %358 = vmatpush.msra.mxu0 0.0
    %359 = vmatpush.msra.mxu0 0.0
    %360 = vmatpush.msra.mxu0 0.0
    %361 = vmatpush.msra.mxu0 0.0
    %362 = vmatpush.msra.mxu0 0.0
    %363 = vmatpush.msra.mxu0 0.0
    %364 = vmatpush.msra.mxu0 0.0
    %365 = vmatpush.msra.mxu0 0.0
    %366 = vmatpush.msra.mxu0 0.0
    %367 = vmatpush.msra.mxu0 0.0
    %368 = vmatpush.msra.mxu0 0.0
    %369 = vmatpush.msra.mxu0 0.0
    %370 = vmatpush.msra.mxu0 %v73
    %371 = vmatpush.msra.mxu0 %v41
    %372 = vmatmul.f32.gmra.mxu0 %v94
    %v373 = vpop.f32.mrf.mxu0
    %v374 = vadd.f32 0.0, %v373
    %375 = vdwg.mxu0
    %376 = vmatpush.msra.mxu0 0.0
    %377 = vmatpush.msra.mxu0 0.0
    %378 = vmatpush.msra.mxu0 0.0
    %379 = vmatpush.msra.mxu0 0.0
    %380 = vmatpush.msra.mxu0 0.0
    %381 = vmatpush.msra.mxu0 0.0
    %382 = vmatpush.msra.mxu0 0.0
    %383 = vmatpush.msra.mxu0 0.0
    %384 = vmatpush.msra.mxu0 0.0
    %385 = vmatpush.msra.mxu0 0.0
    %386 = vmatpush.msra.mxu0 0.0
    %387 = vmatpush.msra.mxu0 0.0
    %388 = vmatpush.msra.mxu0 0.0
    %389 = vmatpush.msra.mxu0 0.0
    %390 = vmatpush.msra.mxu0 %v74
    %391 = vmatpush.msra.mxu0 %v42
    %392 = vmatmul.f32.gmra.mxu0 %v94
    %v393 = vpop.f32.mrf.mxu0
    %v394 = vadd.f32 0.0, %v393
    %395 = vdwg.mxu0
    %396 = vmatpush.msra.mxu0 0.0
    %397 = vmatpush.msra.mxu0 0.0
    %398 = vmatpush.msra.mxu0 0.0
    %399 = vmatpush.msra.mxu0 0.0
    %400 = vmatpush.msra.mxu0 0.0
    %401 = vmatpush.msra.mxu0 0.0
    %402 = vmatpush.msra.mxu0 0.0
    %403 = vmatpush.msra.mxu0 0.0
    %404 = vmatpush.msra.mxu0 0.0
    %405 = vmatpush.msra.mxu0 0.0
    %406 = vmatpush.msra.mxu0 0.0
    %407 = vmatpush.msra.mxu0 0.0
    %408 = vmatpush.msra.mxu0 0.0
    %409 = vmatpush.msra.mxu0 0.0
    %410 = vmatpush.msra.mxu0 %v75
    %411 = vmatpush.msra.mxu0 %v43
    %412 = vmatmul.f32.gmra.mxu0 %v94
    %v413 = vpop.f32.mrf.mxu0
    %v414 = vadd.f32 0.0, %v413
    %415 = vdwg.mxu0
    %416 = vmatpush.msra.mxu0 0.0
    %417 = vmatpush.msra.mxu0 0.0
    %418 = vmatpush.msra.mxu0 0.0
    %419 = vmatpush.msra.mxu0 0.0
    %420 = vmatpush.msra.mxu0 0.0
    %421 = vmatpush.msra.mxu0 0.0
    %422 = vmatpush.msra.mxu0 0.0
    %423 = vmatpush.msra.mxu0 0.0
    %424 = vmatpush.msra.mxu0 0.0
    %425 = vmatpush.msra.mxu0 0.0
    %426 = vmatpush.msra.mxu0 0.0
    %427 = vmatpush.msra.mxu0 0.0
    %428 = vmatpush.msra.mxu0 0.0
    %429 = vmatpush.msra.mxu0 0.0
    %430 = vmatpush.msra.mxu0 %v76
    %431 = vmatpush.msra.mxu0 %v44
    %432 = vmatmul.f32.gmra.mxu0 %v94
    %v433 = vpop.f32.mrf.mxu0
    %v434 = vadd.f32 0.0, %v433
    %435 = vdwg.mxu0
    %436 = vmatpush.msra.mxu0 0.0
    %437 = vmatpush.msra.mxu0 0.0
    %438 = vmatpush.msra.mxu0 0.0
    %439 = vmatpush.msra.mxu0 0.0
    %440 = vmatpush.msra.mxu0 0.0
    %441 = vmatpush.msra.mxu0 0.0
    %442 = vmatpush.msra.mxu0 0.0
    %443 = vmatpush.msra.mxu0 0.0
    %444 = vmatpush.msra.mxu0 0.0
    %445 = vmatpush.msra.mxu0 0.0
    %446 = vmatpush.msra.mxu0 0.0
    %447 = vmatpush.msra.mxu0 0.0
    %448 = vmatpush.msra.mxu0 0.0
    %449 = vmatpush.msra.mxu0 0.0
    %450 = vmatpush.msra.mxu0 %v77
    %451 = vmatpush.msra.mxu0 %v45
    %452 = vmatmul.f32.gmra.mxu0 %v94
    %v453 = vpop.f32.mrf.mxu0
    %v454 = vadd.f32 0.0, %v453
    %455 = vdwg.mxu0
    %456 = vmatpush.msra.mxu0 0.0
    %457 = vmatpush.msra.mxu0 0.0
    %458 = vmatpush.msra.mxu0 0.0
    %459 = vmatpush.msra.mxu0 0.0
    %460 = vmatpush.msra.mxu0 0.0
    %461 = vmatpush.msra.mxu0 0.0
    %462 = vmatpush.msra.mxu0 0.0
    %463 = vmatpush.msra.mxu0 0.0
    %464 = vmatpush.msra.mxu0 0.0
    %465 = vmatpush.msra.mxu0 0.0
    %466 = vmatpush.msra.mxu0 0.0
    %467 = vmatpush.msra.mxu0 0.0
    %468 = vmatpush.msra.mxu0 0.0
    %469 = vmatpush.msra.mxu0 0.0
    %470 = vmatpush.msra.mxu0 %v78
    %471 = vmatpush.msra.mxu0 %v46
    %472 = vmatmul.f32.gmra.mxu0 %v94
    %v473 = vpop.f32.mrf.mxu0
    %v474 = vadd.f32 0.0, %v473
    %475 = vdwg.mxu0
    %476 = vmatpush.msra.mxu0 0.0
    %477 = vmatpush.msra.mxu0 0.0
    %478 = vmatpush.msra.mxu0 0.0
    %479 = vmatpush.msra.mxu0 0.0
    %480 = vmatpush.msra.mxu0 0.0
    %481 = vmatpush.msra.mxu0 0.0
    %482 = vmatpush.msra.mxu0 0.0
    %483 = vmatpush.msra.mxu0 0.0
    %484 = vmatpush.msra.mxu0 0.0
    %485 = vmatpush.msra.mxu0 0.0
    %486 = vmatpush.msra.mxu0 0.0
    %487 = vmatpush.msra.mxu0 0.0
    %488 = vmatpush.msra.mxu0 0.0
    %489 = vmatpush.msra.mxu0 0.0
    %490 = vmatpush.msra.mxu0 %v79
    %491 = vmatpush.msra.mxu0 %v47
    %492 = vmatmul.f32.gmra.mxu0 %v94
    %v493 = vpop.f32.mrf.mxu0
    %v494 = vadd.f32 0.0, %v493
    %495 = vdwg.mxu0
    %496 = vmatpush.msra.mxu0 0.0
    %497 = vmatpush.msra.mxu0 0.0
    %498 = vmatpush.msra.mxu0 0.0
    %499 = vmatpush.msra.mxu0 0.0
    %500 = vmatpush.msra.mxu0 0.0
    %501 = vmatpush.msra.mxu0 0.0
    %502 = vmatpush.msra.mxu0 0.0
    %503 = vmatpush.msra.mxu0 0.0
    %504 = vmatpush.msra.mxu0 0.0
    %505 = vmatpush.msra.mxu0 0.0
    %506 = vmatpush.msra.mxu0 0.0
    %507 = vmatpush.msra.mxu0 0.0
    %508 = vmatpush.msra.mxu0 0.0
    %509 = vmatpush.msra.mxu0 0.0
    %510 = vmatpush.msra.mxu0 %v80
    %511 = vmatpush.msra.mxu0 %v48
    %512 = vmatmul.f32.gmra.mxu0 %v94
    %v513 = vpop.f32.mrf.mxu0
    %v514 = vadd.f32 0.0, %v513
    %515 = vdwg.mxu0
    %516 = vmatpush.msra.mxu0 0.0
    %517 = vmatpush.msra.mxu0 0.0
    %518 = vmatpush.msra.mxu0 0.0
    %519 = vmatpush.msra.mxu0 0.0
    %520 = vmatpush.msra.mxu0 0.0
    %521 = vmatpush.msra.mxu0 0.0
    %522 = vmatpush.msra.mxu0 0.0
    %523 = vmatpush.msra.mxu0 0.0
    %524 = vmatpush.msra.mxu0 0.0
    %525 = vmatpush.msra.mxu0 0.0
    %526 = vmatpush.msra.mxu0 0.0
    %527 = vmatpush.msra.mxu0 0.0
    %528 = vmatpush.msra.mxu0 0.0
    %529 = vmatpush.msra.mxu0 0.0
    %530 = vmatpush.msra.mxu0 %v81
    %531 = vmatpush.msra.mxu0 %v49
    %532 = vmatmul.f32.gmra.mxu0 %v94
    %v533 = vpop.f32.mrf.mxu0
    %v534 = vadd.f32 0.0, %v533
    %535 = vdwg.mxu0
    %536 = vmatpush.msra.mxu0 0.0
    %537 = vmatpush.msra.mxu0 0.0
    %538 = vmatpush.msra.mxu0 0.0
    %539 = vmatpush.msra.mxu0 0.0
    %540 = vmatpush.msra.mxu0 0.0
    %541 = vmatpush.msra.mxu0 0.0
    %542 = vmatpush.msra.mxu0 0.0
    %543 = vmatpush.msra.mxu0 0.0
    %544 = vmatpush.msra.mxu0 0.0
    %545 = vmatpush.msra.mxu0 0.0
    %546 = vmatpush.msra.mxu0 0.0
    %547 = vmatpush.msra.mxu0 0.0
    %548 = vmatpush.msra.mxu0 0.0
    %549 = vmatpush.msra.mxu0 0.0
    %550 = vmatpush.msra.mxu0 %v82
    %551 = vmatpush.msra.mxu0 %v50
    %552 = vmatmul.f32.gmra.mxu0 %v94
    %v553 = vpop.f32.mrf.mxu0
    %v554 = vadd.f32 0.0, %v553
    %555 = vdwg.mxu0
    %556 = vmatpush.msra.mxu0 0.0
    %557 = vmatpush.msra.mxu0 0.0
    %558 = vmatpush.msra.mxu0 0.0
    %559 = vmatpush.msra.mxu0 0.0
    %560 = vmatpush.msra.mxu0 0.0
    %561 = vmatpush.msra.mxu0 0.0
    %562 = vmatpush.msra.mxu0 0.0
    %563 = vmatpush.msra.mxu0 0.0
    %564 = vmatpush.msra.mxu0 0.0
    %565 = vmatpush.msra.mxu0 0.0
    %566 = vmatpush.msra.mxu0 0.0
    %567 = vmatpush.msra.mxu0 0.0
    %568 = vmatpush.msra.mxu0 0.0
    %569 = vmatpush.msra.mxu0 0.0
    %570 = vmatpush.msra.mxu0 %v83
    %571 = vmatpush.msra.mxu0 %v51
    %572 = vmatmul.f32.gmra.mxu0 %v94
    %v573 = vpop.f32.mrf.mxu0
    %v574 = vadd.f32 0.0, %v573
    %575 = vdwg.mxu0
    %576 = vmatpush.msra.mxu0 0.0
    %577 = vmatpush.msra.mxu0 0.0
    %578 = vmatpush.msra.mxu0 0.0
    %579 = vmatpush.msra.mxu0 0.0
    %580 = vmatpush.msra.mxu0 0.0
    %581 = vmatpush.msra.mxu0 0.0
    %582 = vmatpush.msra.mxu0 0.0
    %583 = vmatpush.msra.mxu0 0.0
    %584 = vmatpush.msra.mxu0 0.0
    %585 = vmatpush.msra.mxu0 0.0
    %586 = vmatpush.msra.mxu0 0.0
    %587 = vmatpush.msra.mxu0 0.0
    %588 = vmatpush.msra.mxu0 0.0
    %589 = vmatpush.msra.mxu0 0.0
    %590 = vmatpush.msra.mxu0 %v84
    %591 = vmatpush.msra.mxu0 %v52
    %592 = vmatmul.f32.gmra.mxu0 %v94
    %v593 = vpop.f32.mrf.mxu0
    %v594 = vadd.f32 0.0, %v593
    %595 = vdwg.mxu0
    %596 = vmatpush.msra.mxu0 0.0
    %597 = vmatpush.msra.mxu0 0.0
    %598 = vmatpush.msra.mxu0 0.0
    %599 = vmatpush.msra.mxu0 0.0
    %600 = vmatpush.msra.mxu0 0.0
    %601 = vmatpush.msra.mxu0 0.0
    %602 = vmatpush.msra.mxu0 0.0
    %603 = vmatpush.msra.mxu0 0.0
    %604 = vmatpush.msra.mxu0 0.0
    %605 = vmatpush.msra.mxu0 0.0
    %606 = vmatpush.msra.mxu0 0.0
    %607 = vmatpush.msra.mxu0 0.0
    %608 = vmatpush.msra.mxu0 0.0
    %609 = vmatpush.msra.mxu0 0.0
    %610 = vmatpush.msra.mxu0 %v85
    %611 = vmatpush.msra.mxu0 %v53
    %612 = vmatmul.f32.gmra.mxu0 %v94
    %v613 = vpop.f32.mrf.mxu0
    %v614 = vadd.f32 0.0, %v613
    %615 = vdwg.mxu0
    %616 = vmatpush.msra.mxu0 0.0
    %617 = vmatpush.msra.mxu0 0.0
    %618 = vmatpush.msra.mxu0 0.0
    %619 = vmatpush.msra.mxu0 0.0
    %620 = vmatpush.msra.mxu0 0.0
    %621 = vmatpush.msra.mxu0 0.0
    %622 = vmatpush.msra.mxu0 0.0
    %623 = vmatpush.msra.mxu0 0.0
    %624 = vmatpush.msra.mxu0 0.0
    %625 = vmatpush.msra.mxu0 0.0
    %626 = vmatpush.msra.mxu0 0.0
    %627 = vmatpush.msra.mxu0 0.0
    %628 = vmatpush.msra.mxu0 0.0
    %629 = vmatpush.msra.mxu0 0.0
    %630 = vmatpush.msra.mxu0 %v86
    %631 = vmatpush.msra.mxu0 %v54
    %632 = vmatmul.f32.gmra.mxu0 %v94
    %v633 = vpop.f32.mrf.mxu0
    %v634 = vadd.f32 0.0, %v633
    %635 = vdwg.mxu0
    %636 = vmatpush.msra.mxu0 0.0
    %637 = vmatpush.msra.mxu0 0.0
    %638 = vmatpush.msra.mxu0 0.0
    %639 = vmatpush.msra.mxu0 0.0
    %640 = vmatpush.msra.mxu0 0.0
    %641 = vmatpush.msra.mxu0 0.0
    %642 = vmatpush.msra.mxu0 0.0
    %643 = vmatpush.msra.mxu0 0.0
    %644 = vmatpush.msra.mxu0 0.0
    %645 = vmatpush.msra.mxu0 0.0
    %646 = vmatpush.msra.mxu0 0.0
    %647 = vmatpush.msra.mxu0 0.0
    %648 = vmatpush.msra.mxu0 0.0
    %649 = vmatpush.msra.mxu0 0.0
    %650 = vmatpush.msra.mxu0 %v87
    %651 = vmatpush.msra.mxu0 %v55
    %652 = vmatmul.f32.gmra.mxu0 %v94
    %v653 = vpop.f32.mrf.mxu0
    %v654 = vadd.f32 0.0, %v653
    %655 = vdwg.mxu0
    %656 = vmatpush.msra.mxu0 0.0
    %657 = vmatpush.msra.mxu0 0.0
    %658 = vmatpush.msra.mxu0 0.0
    %659 = vmatpush.msra.mxu0 0.0
    %660 = vmatpush.msra.mxu0 0.0
    %661 = vmatpush.msra.mxu0 0.0
    %662 = vmatpush.msra.mxu0 0.0
    %663 = vmatpush.msra.mxu0 0.0
    %664 = vmatpush.msra.mxu0 0.0
    %665 = vmatpush.msra.mxu0 0.0
    %666 = vmatpush.msra.mxu0 0.0
    %667 = vmatpush.msra.mxu0 0.0
    %668 = vmatpush.msra.mxu0 0.0
    %669 = vmatpush.msra.mxu0 0.0
    %670 = vmatpush.msra.mxu0 %v88
    %671 = vmatpush.msra.mxu0 %v56
    %672 = vmatmul.f32.gmra.mxu0 %v94
    %v673 = vpop.f32.mrf.mxu0
    %v674 = vadd.f32 0.0, %v673
    %675 = vdwg.mxu0
    %676 = vmatpush.msra.mxu0 0.0
    %677 = vmatpush.msra.mxu0 0.0
    %678 = vmatpush.msra.mxu0 0.0
    %679 = vmatpush.msra.mxu0 0.0
    %680 = vmatpush.msra.mxu0 0.0
    %681 = vmatpush.msra.mxu0 0.0
    %682 = vmatpush.msra.mxu0 0.0
    %683 = vmatpush.msra.mxu0 0.0
    %684 = vmatpush.msra.mxu0 0.0
    %685 = vmatpush.msra.mxu0 0.0
    %686 = vmatpush.msra.mxu0 0.0
    %687 = vmatpush.msra.mxu0 0.0
    %688 = vmatpush.msra.mxu0 0.0
    %689 = vmatpush.msra.mxu0 0.0
    %690 = vmatpush.msra.mxu0 %v89
    %691 = vmatpush.msra.mxu0 %v57
    %692 = vmatmul.f32.gmra.mxu0 %v94
    %v693 = vpop.f32.mrf.mxu0
    %v694 = vadd.f32 0.0, %v693
    %695 = vdwg.mxu0
    %696 = vmatpush.msra.mxu0 0.0
    %697 = vmatpush.msra.mxu0 0.0
    %698 = vmatpush.msra.mxu0 0.0
    %699 = vmatpush.msra.mxu0 0.0
    %700 = vmatpush.msra.mxu0 0.0
    %701 = vmatpush.msra.mxu0 0.0
    %702 = vmatpush.msra.mxu0 0.0
    %703 = vmatpush.msra.mxu0 0.0
    %704 = vmatpush.msra.mxu0 0.0
    %705 = vmatpush.msra.mxu0 0.0
    %706 = vmatpush.msra.mxu0 0.0
    %707 = vmatpush.msra.mxu0 0.0
    %708 = vmatpush.msra.mxu0 0.0
    %709 = vmatpush.msra.mxu0 0.0
    %710 = vmatpush.msra.mxu0 %v90
    %711 = vmatpush.msra.mxu0 %v58
    %712 = vmatmul.f32.gmra.mxu0 %v94
    %v713 = vpop.f32.mrf.mxu0
    %v714 = vadd.f32 0.0, %v713
    %715 = vdwg.mxu0
    %716 = vmatpush.msra.mxu0 0.0
    %717 = vmatpush.msra.mxu0 0.0
    %718 = vmatpush.msra.mxu0 0.0
    %719 = vmatpush.msra.mxu0 0.0
    %720 = vmatpush.msra.mxu0 0.0
    %721 = vmatpush.msra.mxu0 0.0
    %722 = vmatpush.msra.mxu0 0.0
    %723 = vmatpush.msra.mxu0 0.0
    %724 = vmatpush.msra.mxu0 0.0
    %725 = vmatpush.msra.mxu0 0.0
    %726 = vmatpush.msra.mxu0 0.0
    %727 = vmatpush.msra.mxu0 0.0
    %728 = vmatpush.msra.mxu0 0.0
    %729 = vmatpush.msra.mxu0 0.0
    %730 = vmatpush.msra.mxu0 %v91
    %731 = vmatpush.msra.mxu0 %v59
    %732 = vmatmul.f32.gmra.mxu0 %v94
    %v733 = vpop.f32.mrf.mxu0
    %v734 = vadd.f32 0.0, %v733
    %735 = vdwg.mxu0
    %v768 = vrot.slane %v134, 6
    %v769 = vrot.slane %v154, 4
    %v770 = vrot.slane %v174, 2
    %v771 = vrot.slane %v214, 6
    %v772 = vrot.slane %v234, 4
    %v773 = vrot.slane %v254, 2
    %v774 = vrot.slane %v294, 6
    %v775 = vrot.slane %v314, 4
    %v776 = vrot.slane %v334, 2
    %v777 = vrot.slane %v374, 6
    %v778 = vrot.slane %v394, 4
    %v779 = vrot.slane %v414, 2
    %v780 = vrot.slane %v454, 6
    %v781 = vrot.slane %v474, 4
    %v782 = vrot.slane %v494, 2
    %v783 = vrot.slane %v534, 6
    %v784 = vrot.slane %v554, 4
    %v785 = vrot.slane %v574, 2
    %v786 = vrot.slane %v614, 6
    %v787 = vrot.slane %v634, 4
    %v788 = vrot.slane %v654, 2
    %v789 = vrot.slane %v694, 6
    %v790 = vrot.slane %v714, 4
    %v791 = vrot.slane %v734, 2
    %vm792 = vcmask 1041408
    %v793 = vsel %vm792, %v114, %v768
    %vm794 = vcmask 1045508
    %v795 = vsel %vm794, %v769, %v770
    %vm796 = vcmask 1043456
    %v797 = vsel %vm796, %v793, %v795
    %v798 = vsel %vm792, %v194, %v771
    %v799 = vsel %vm794, %v772, %v773
    %v800 = vsel %vm796, %v798, %v799
    %v801 = vsel %vm792, %v274, %v774
    %v802 = vsel %vm794, %v775, %v776
    %v803 = vsel %vm796, %v801, %v802
    %v804 = vsel %vm792, %v354, %v777
    %v805 = vsel %vm794, %v778, %v779
    %v806 = vsel %vm796, %v804, %v805
    %v807 = vsel %vm792, %v434, %v780
    %v808 = vsel %vm794, %v781, %v782
    %v809 = vsel %vm796, %v807, %v808
    %v810 = vsel %vm792, %v514, %v783
    %v811 = vsel %vm794, %v784, %v785
    %v812 = vsel %vm796, %v810, %v811
    %v813 = vsel %vm792, %v594, %v786
    %v814 = vsel %vm794, %v787, %v788
    %v815 = vsel %vm796, %v813, %v814
    %v816 = vsel %vm792, %v674, %v789
    %v817 = vsel %vm794, %v790, %v791
    %v818 = vsel %vm796, %v816, %v817
    %827 = vst [vmem:[%s2] sm:$0xff] %v797
    %828 = vst [vmem:[%s2 + $0x8] sm:$0xff] %v800
    %829 = vst [vmem:[%s2 + $0x10] sm:$0xff] %v803
    %830 = vst [vmem:[%s2 + $0x18] sm:$0xff] %v806
    %831 = vst [vmem:[%s2 + $0x20] sm:$0xff] %v809
    %832 = vst [vmem:[%s2 + $0x28] sm:$0xff] %v812
    %833 = vst [vmem:[%s2 + $0x30] sm:$0xff] %v815
    %834 = vst [vmem:[%s2 + $0x38] sm:$0xff] %v818
    // Predicated region
    $region14: #{face_model_geometry.1} parent=1 // pred_check
      _
    $region15: #{face_model_geometry.1} parent=1 // pred_check_branch
      %836 = sbr.rel (0) target = $region17
    $region16: #{face_model_geometry.1} parent=1 // pred_region
      _
    $region17: #{face_model_geometry.1} parent=1 // pred_fallthru
      _
    // Predicated region
    $region18: #{face_model_geometry.1} parent=1 // pred_check
      _
    $region19: #{face_model_geometry.1} parent=1 // pred_check_branch
      %838 = sbr.rel (0) target = $region21
    $region20: #{face_model_geometry.1} parent=1 // pred_region
      _
    $region21: #{face_model_geometry.1} parent=1 // pred_fallthru
      _
    %839 = vsyncpa [#allocation3], 1

</llo_original>
